<compile_context>
chip_gen: v7x
topology: tpu7x:2x2x1
jax: 0.10.0
libtpu: 0.0.40
codegen_flags: <defaults>
</compile_context>

<pallas_src>
import jax
import jax.numpy as jnp
from jax import lax
from jax.experimental import pallas as pl
from jax.experimental.pallas import tpu as pltpu


def _round_up(n, m):
    return ((n + m - 1) // m) * m


def mlp_kernel(x_ref, w1_ref, b1_ref, w2_ref, b2_ref, w3_ref, b3_ref, o_ref):
    # act: (tb, in_features), w: (out_features, in_features)  ->  (tb, out_features)
    # Contract the feature axis of both operands (A @ B^T form, MXU-friendly).
    def linear(act, w_ref, b_ref):
        y = lax.dot_general(act, w_ref[...],
                            dimension_numbers=(((1,), (1,)), ((), ())),
                            preferred_element_type=jnp.float32)
        return y + b_ref[...]                      # bias row broadcasts over sublanes

    x = x_ref[...]                                 # (tb, num_inputs) f32, native layout
    h1 = jnp.maximum(linear(x, w1_ref, b1_ref), 0.0)    # (tb, 30)
    h2 = jnp.maximum(linear(h1, w2_ref, b2_ref), 0.0)   # (tb, 20)
    o_ref[...] = linear(h2, w3_ref, b3_ref).astype(o_ref.dtype)   # (tb, num_outputs)


def neural_network_forward(x, params, *, tb=4096):
    """Forward pass of NeuralNetwork.

    x: (batch, num_inputs) f32.  params in PyTorch nn.Linear convention:
    w (out_features, in_features), b (out_features,).  Returns (batch, num_outputs) f32.
    """
    w1, b1, w2, b2, w3, b3 = params
    batch, num_inputs = x.shape
    num_outputs = w3.shape[0]

    # Tile selection (review items): 256-aligned target; small batches -> one full-extent
    # tile (no padding waste); large batches -> keep >= 2 tiles so both v7x TCs get work.
    tb = max(256, _round_up(int(tb), 256))
    if batch <= 512:
        tb = batch                                         # single tile, exact extent
    else:
        tb = min(tb, _round_up(pl.cdiv(batch, 2), 256))    # >= 2 tiles, 256-aligned
    grid = (pl.cdiv(batch, tb),)

    # Biases as (1, out_features) rows -> broadcast across the batch (sublane) axis.
    b1r, b2r, b3r = (b.reshape(1, -1).astype(jnp.float32) for b in (b1, b2, b3))

    # Weights/biases: full block, constant index map -> resident in VMEM across all tiles.
    def resident(a):
        return pl.BlockSpec(a.shape, lambda i, _nd=a.ndim: (0,) * _nd)

    flops = 2 * batch * (num_inputs * 30 + 30 * 20 + 20 * num_outputs)
    param_bytes = sum(int(p.size) * 4 for p in (w1, b1r, w2, b2r, w3, b3r))
    bytes_accessed = batch * (num_inputs + num_outputs) * 4 + param_bytes

    return pl.pallas_call(
        mlp_kernel,
        out_shape=jax.ShapeDtypeStruct((batch, num_outputs), jnp.float32),
        grid=grid,
        in_specs=[
            pl.BlockSpec((tb, num_inputs), lambda i: (i, 0)),   # x tile, native layout
            resident(w1), resident(b1r),
            resident(w2), resident(b2r),
            resident(w3), resident(b3r),
        ],
        out_specs=pl.BlockSpec((tb, num_outputs), lambda i: (i, 0)),
        compiler_params=pltpu.CompilerParams(
            dimension_semantics=("parallel",),        # shard batch tiles across TCs (v7x)
            vmem_limit_bytes=32 * 1024 * 1024,        # headroom on v7x 64 MiB physical
        ),
        cost_estimate=pl.CostEstimate(
            flops=flops, transcendentals=0, bytes_accessed=bytes_accessed),
    )(x, w1, b1r, w2, b2r, w3, b3r)


def init_params(key, num_inputs, num_outputs):
    """Deterministic init mirroring torch.nn.Linear's U(-1/sqrt(in), 1/sqrt(in))."""
    dims = [(num_inputs, 30), (30, 20), (20, num_outputs)]
    params = []
    for fan_in, fan_out in dims:
        key, kw, kb = jax.random.split(key, 3)
        bound = float(fan_in) ** -0.5
        w = jax.random.uniform(kw, (fan_out, fan_in), jnp.float32, -bound, bound)
        b = jax.random.uniform(kb, (fan_out,), jnp.float32, -bound, bound)
        params += [w, b]
    return tuple(params)


def reference_forward(x, params):
    """Pure-JAX f32 reference (PyTorch semantics)."""
    w1, b1, w2, b2, w3, b3 = params
    hp = jax.lax.Precision.HIGHEST
    h1 = jnp.maximum(jnp.dot(x, w1.T, precision=hp) + b1, 0.0)
    h2 = jnp.maximum(jnp.dot(h1, w2.T, precision=hp) + b2, 0.0)
    return jnp.dot(h2, w3.T, precision=hp) + b3


if __name__ == "__main__":
    key = jax.random.PRNGKey(0)
    num_inputs, num_outputs = 2, 2            # matches the book's 2-feature toy data
    kx, kp, kx2 = jax.random.split(key, 3)
    params = init_params(kp, num_inputs, num_outputs)

    # Small batch: single full-extent tile, no padding.
    x_small = jax.random.normal(kx, (8, num_inputs), jnp.float32)
    logits = neural_network_forward(x_small, params)
    jax.block_until_ready(logits)
    assert logits.shape == (8, num_outputs)
    assert jnp.allclose(logits, reference_forward(x_small, params), atol=1e-3, rtol=1e-3)

    # Larger batch: 2-tile grid (tb=512) with a partial edge block (600 = 512 + 88).
    x_multi = jax.random.normal(kx2, (600, num_inputs), jnp.float32)
    logits_multi = neural_network_forward(x_multi, params)
    jax.block_until_ready(logits_multi)
    assert logits_multi.shape == (600, num_outputs)
    assert jnp.allclose(logits_multi, reference_forward(x_multi, params),
                        atol=1e-3, rtol=1e-3)

    print("KERNEL_OK")
</pallas_src>

<mosaic_0001>
module attributes {stable_mosaic.version = 11 : i64} {
  func.func @mlp_kernel(%arg0: i32, %arg1: memref<8x2xf32, #tpu.memory_space<vmem>>, %arg2: memref<30x2xf32, #tpu.memory_space<vmem>>, %arg3: memref<1x30xf32, #tpu.memory_space<vmem>>, %arg4: memref<20x30xf32, #tpu.memory_space<vmem>>, %arg5: memref<1x20xf32, #tpu.memory_space<vmem>>, %arg6: memref<2x20xf32, #tpu.memory_space<vmem>>, %arg7: memref<1x2xf32, #tpu.memory_space<vmem>>, %arg8: memref<8x2xf32, #tpu.memory_space<vmem>>) attributes {dimension_semantics = [#tpu.dimension_semantics<parallel>], iteration_bounds = array<i64: 1>, scalar_prefetch = 0 : i64, scratch_operands = 0 : i64, tpu.core_type = #tpu.core_type<tc>, window_params = [{transform_indices = @transform_0, window_bounds = array<i64: 8, 2>}, {pipeline_mode = #tpu.pipeline_mode<synchronous>, transform_indices = @transform_1, window_bounds = array<i64: 30, 2>}, {pipeline_mode = #tpu.pipeline_mode<synchronous>, transform_indices = @transform_2, window_bounds = array<i64: 1, 30>}, {pipeline_mode = #tpu.pipeline_mode<synchronous>, transform_indices = @transform_3, window_bounds = array<i64: 20, 30>}, {pipeline_mode = #tpu.pipeline_mode<synchronous>, transform_indices = @transform_4, window_bounds = array<i64: 1, 20>}, {pipeline_mode = #tpu.pipeline_mode<synchronous>, transform_indices = @transform_5, window_bounds = array<i64: 2, 20>}, {pipeline_mode = #tpu.pipeline_mode<synchronous>, transform_indices = @transform_6, window_bounds = array<i64: 1, 2>}, {transform_indices = @transform_7, window_bounds = array<i64: 8, 2>}]} {
    %c0 = arith.constant 0 : index
    %c0_0 = arith.constant 0 : index
    %0 = vector.load %arg1[%c0, %c0_0] : memref<8x2xf32, #tpu.memory_space<vmem>>, vector<8x2xf32>
    %c0_1 = arith.constant 0 : index
    %c0_2 = arith.constant 0 : index
    %1 = vector.load %arg2[%c0_1, %c0_2] : memref<30x2xf32, #tpu.memory_space<vmem>>, vector<30x2xf32>
    %cst = arith.constant dense<0.000000e+00> : vector<8x30xf32>
    %2 = tpu.matmul %0, %1, %cst {dimension_numbers = #tpu.dot_dimension_numbers<[1], [1], [0], [0], [0, 0, 1, 0], [], []>} : vector<8x2xf32>, vector<30x2xf32>, vector<8x30xf32> -> vector<8x30xf32>
    %c0_3 = arith.constant 0 : index
    %c0_4 = arith.constant 0 : index
    %3 = vector.load %arg3[%c0_3, %c0_4] : memref<1x30xf32, #tpu.memory_space<vmem>>, vector<1x30xf32>
    %4 = vector.broadcast %3 : vector<1x30xf32> to vector<8x30xf32>
    %5 = arith.addf %2, %4 : vector<8x30xf32>
    %cst_5 = arith.constant 0.000000e+00 : f32
    %6 = vector.broadcast %cst_5 : f32 to vector<8x30xf32>
    %7 = arith.maximumf %5, %6 : vector<8x30xf32>
    %c0_6 = arith.constant 0 : index
    %c0_7 = arith.constant 0 : index
    %8 = vector.load %arg4[%c0_6, %c0_7] : memref<20x30xf32, #tpu.memory_space<vmem>>, vector<20x30xf32>
    %cst_8 = arith.constant dense<0.000000e+00> : vector<8x20xf32>
    %9 = tpu.matmul %7, %8, %cst_8 {dimension_numbers = #tpu.dot_dimension_numbers<[1], [1], [0], [0], [0, 0, 1, 0], [], []>} : vector<8x30xf32>, vector<20x30xf32>, vector<8x20xf32> -> vector<8x20xf32>
    %c0_9 = arith.constant 0 : index
    %c0_10 = arith.constant 0 : index
    %10 = vector.load %arg5[%c0_9, %c0_10] : memref<1x20xf32, #tpu.memory_space<vmem>>, vector<1x20xf32>
    %11 = vector.broadcast %10 : vector<1x20xf32> to vector<8x20xf32>
    %12 = arith.addf %9, %11 : vector<8x20xf32>
    %cst_11 = arith.constant 0.000000e+00 : f32
    %13 = vector.broadcast %cst_11 : f32 to vector<8x20xf32>
    %14 = arith.maximumf %12, %13 : vector<8x20xf32>
    %c0_12 = arith.constant 0 : index
    %c0_13 = arith.constant 0 : index
    %15 = vector.load %arg6[%c0_12, %c0_13] : memref<2x20xf32, #tpu.memory_space<vmem>>, vector<2x20xf32>
    %cst_14 = arith.constant dense<0.000000e+00> : vector<8x2xf32>
    %16 = tpu.matmul %14, %15, %cst_14 {dimension_numbers = #tpu.dot_dimension_numbers<[1], [1], [0], [0], [0, 0, 1, 0], [], []>} : vector<8x20xf32>, vector<2x20xf32>, vector<8x2xf32> -> vector<8x2xf32>
    %c0_15 = arith.constant 0 : index
    %c0_16 = arith.constant 0 : index
    %17 = vector.load %arg7[%c0_15, %c0_16] : memref<1x2xf32, #tpu.memory_space<vmem>>, vector<1x2xf32>
    %18 = vector.broadcast %17 : vector<1x2xf32> to vector<8x2xf32>
    %19 = arith.addf %16, %18 : vector<8x2xf32>
    %c0_17 = arith.constant 0 : index
    %c0_18 = arith.constant 0 : index
    %20 = vector.load %arg8[%c0_17, %c0_18] : memref<8x2xf32, #tpu.memory_space<vmem>>, vector<8x2xf32>
    tpu.vector_store %arg8[%c0_17, %c0_18], %19 {strides = array<i32>} : memref<8x2xf32, #tpu.memory_space<vmem>>, vector<8x2xf32>,
    return
  }
  func.func @transform_0(%arg0: i32) -> (i32, i32) {
    %c0_i32 = arith.constant 0 : i32
    %c0_i32_0 = arith.constant 0 : i32
    return %arg0, %c0_i32 : i32, i32
  }
  func.func @transform_1(%arg0: i32) -> (i32, i32) {
    %c0_i32 = arith.constant 0 : i32
    %c0_i32_0 = arith.constant 0 : i32
    %c0_i32_1 = arith.constant 0 : i32
    return %c0_i32, %c0_i32_0 : i32, i32
  }
  func.func @transform_2(%arg0: i32) -> (i32, i32) {
    %c0_i32 = arith.constant 0 : i32
    %c0_i32_0 = arith.constant 0 : i32
    %c0_i32_1 = arith.constant 0 : i32
    return %c0_i32, %c0_i32_0 : i32, i32
  }
  func.func @transform_3(%arg0: i32) -> (i32, i32) {
    %c0_i32 = arith.constant 0 : i32
    %c0_i32_0 = arith.constant 0 : i32
    %c0_i32_1 = arith.constant 0 : i32
    return %c0_i32, %c0_i32_0 : i32, i32
  }
  func.func @transform_4(%arg0: i32) -> (i32, i32) {
    %c0_i32 = arith.constant 0 : i32
    %c0_i32_0 = arith.constant 0 : i32
    %c0_i32_1 = arith.constant 0 : i32
    return %c0_i32, %c0_i32_0 : i32, i32
  }
  func.func @transform_5(%arg0: i32) -> (i32, i32) {
    %c0_i32 = arith.constant 0 : i32
    %c0_i32_0 = arith.constant 0 : i32
    %c0_i32_1 = arith.constant 0 : i32
    return %c0_i32, %c0_i32_0 : i32, i32
  }
  func.func @transform_6(%arg0: i32) -> (i32, i32) {
    %c0_i32 = arith.constant 0 : i32
    %c0_i32_0 = arith.constant 0 : i32
    %c0_i32_1 = arith.constant 0 : i32
    return %c0_i32, %c0_i32_0 : i32, i32
  }
  func.func @transform_7(%arg0: i32) -> (i32, i32) {
    %c0_i32 = arith.constant 0 : i32
    %c0_i32_0 = arith.constant 0 : i32
    return %arg0, %c0_i32 : i32, i32
  }
}

</mosaic_0001>

<llo_original>
// kernel: tpu_custom_call.1
$region0: #{tpu_custom_call.1}
  #allocation0 [shape = 'u32[]', space=smem, size = 0x4, offset = 0x4, fixed_abs, tag = 'smem constant byte address 0x4 - core index']
  #allocation1 [shape = 'u32[144,128]{1,0:T(1,128)}', space=vmem, size = 0x12000, scoped, tag = 'internal scratch']
  %s0 = inlined_call_operand.vmem [shape: f32[8,2], index: 0, kind: input, shape index: {}]
  %s1 = inlined_call_operand.vmem [shape: f32[30,2], index: 1, kind: input, shape index: {}]
  %s2 = inlined_call_operand.vmem [shape: f32[1,30], index: 2, kind: input, shape index: {}]
  %s3 = inlined_call_operand.vmem [shape: f32[20,30], index: 3, kind: input, shape index: {}]
  %s4 = inlined_call_operand.vmem [shape: f32[1,20], index: 4, kind: input, shape index: {}]
  %s5 = inlined_call_operand.vmem [shape: f32[2,20], index: 5, kind: input, shape index: {}]
  %s6 = inlined_call_operand.vmem [shape: f32[1,2], index: 6, kind: input, shape index: {}]
  %s7 = inlined_call_operand.vmem [shape: f32[8,2], index: 7, kind: output, shape index: {}]
  %s8 = sld [smem:[#allocation0]]
  $region38: #{tpu_custom_call.1} parent=0
    _
  %s10 = ssub.s32 1, %s8
  %s11 = scalar_select 0, %s10, %s8
  // Predicated region
  $region2: #{tpu_custom_call.1} parent=0 // pred_check
    _
  $region3: #{tpu_custom_call.1} parent=0 // pred_check_branch
    %13 = sbr.rel (0) target = $region5
  $region4: #{tpu_custom_call.1} parent=0 // pred_region
    _
  $region5: #{tpu_custom_call.1} parent=0 // pred_fallthru
    _
  // Predicated region
  $region6: #{tpu_custom_call.1} parent=0 // pred_check
    _
  $region7: #{tpu_custom_call.1} parent=0 // pred_check_branch
    %15 = sbr.rel (0) target = $region9
  $region8: #{tpu_custom_call.1} parent=0 // pred_region
    _
  $region9: #{tpu_custom_call.1} parent=0 // pred_fallthru
    _
  // Predicated region
  $region10: #{tpu_custom_call.1} parent=0 // pred_check
    _
  $region11: #{tpu_custom_call.1} parent=0 // pred_check_branch
    %17 = sbr.rel (0) target = $region13
  $region12: #{tpu_custom_call.1} parent=0 // pred_region
    _
  $region13: #{tpu_custom_call.1} parent=0 // pred_fallthru
    _
  // Predicated region
  $region14: #{tpu_custom_call.1} parent=0 // pred_check
    _
  $region15: #{tpu_custom_call.1} parent=0 // pred_check_branch
    %19 = sbr.rel (0) target = $region17
  $region16: #{tpu_custom_call.1} parent=0 // pred_region
    _
  $region17: #{tpu_custom_call.1} parent=0 // pred_fallthru
    _
  // Predicated region
  $region18: #{tpu_custom_call.1} parent=0 // pred_check
    _
  $region19: #{tpu_custom_call.1} parent=0 // pred_check_branch
    %21 = sbr.rel (0) target = $region21
  $region20: #{tpu_custom_call.1} parent=0 // pred_region
    _
  $region21: #{tpu_custom_call.1} parent=0 // pred_fallthru
    _
  // Predicated region
  $region22: #{tpu_custom_call.1} parent=0 // pred_check
    _
  $region23: #{tpu_custom_call.1} parent=0 // pred_check_branch
    %23 = sbr.rel (0) target = $region25
  $region24: #{tpu_custom_call.1} parent=0 // pred_region
    _
  $region25: #{tpu_custom_call.1} parent=0 // pred_fallthru
    _
  // Predicated region
  $region26: #{tpu_custom_call.1} parent=0 // pred_check
    _
  $region27: #{tpu_custom_call.1} parent=0 // pred_check_branch
    %25 = sbr.rel (0) target = $region29
  $region28: #{tpu_custom_call.1} parent=0 // pred_region
    _
  $region29: #{tpu_custom_call.1} parent=0 // pred_fallthru
    _
  %v26 = vld [vmem:[%s0] sm:$0xff]
  %v27 = vld [vmem:[%s1] sm:$0xff]
  %v28 = vld [vmem:[%s1 + $0x8] sm:$0xff]
  %v29 = vld [vmem:[%s1 + $0x10] sm:$0xff]
  %v30 = vld [vmem:[%s1 + $0x18] sm:$0x3f]
  %v31 = vld [vmem:[%s2] sm:$0x1]
  %v33 = vlaneseq
  %v34 = vshrl.u32 %v33, 7
  %v35 = vsub.s32 0, %v34
  %v36 = vrot.slane %v31, %v35
  %vm38 = vcmask 15360
  %v40 = vsel %vm38, %v26, 0
  %v43 = vsel %vm38, %v27, 0
  %v46 = vsel %vm38, %v28, 0
  %v49 = vsel %vm38, %v29, 0
  %v52 = vsel %vm38, %v30, 0
  %54 = vmatprep.subr.mxu0 0.0
  %55 = vmatpush1.xpose.msra.mxu0 %v43
  %56 = vmatprep.subr.mxu0 0.0
  %57 = vmatpush1.xpose.msra.mxu0 %v46
  %58 = vmatprep.subr.mxu0 0.0
  %59 = vmatpush1.xpose.msra.mxu0 %v49
  %60 = vmatprep.subr.mxu0 0.0
  %61 = vmatpush1.xpose.msra.mxu0 %v52
  %62 = vmatprep.subr.mxu0 0.0
  %63 = vmatpush1.xpose.msra.mxu0 0.0
  %64 = vmatprep.subr.mxu0 0.0
  %65 = vmatpush1.xpose.msra.mxu0 0.0
  %66 = vmatprep.subr.mxu0 0.0
  %67 = vmatpush1.xpose.msra.mxu0 0.0
  %68 = vmatprep.subr.mxu0 0.0
  %69 = vmatpush1.xpose.msra.mxu0 0.0
  %70 = vmatprep.subr.mxu0 0.0
  %71 = vmatpush1.xpose.msra.mxu0 0.0
  %72 = vmatprep.subr.mxu0 0.0
  %73 = vmatpush1.xpose.msra.mxu0 0.0
  %74 = vmatprep.subr.mxu0 0.0
  %75 = vmatpush1.xpose.msra.mxu0 0.0
  %76 = vmatprep.subr.mxu0 0.0
  %77 = vmatpush1.xpose.msra.mxu0 0.0
  %78 = vmatprep.subr.mxu0 0.0
  %79 = vmatpush1.xpose.msra.mxu0 0.0
  %80 = vmatprep.subr.mxu0 0.0
  %81 = vmatpush1.xpose.msra.mxu0 0.0
  %82 = vmatprep.subr.mxu0 0.0
  %83 = vmatpush1.xpose.msra.mxu0 0.0
  %84 = vmatprep.subr.mxu0 0.0
  %85 = vmatpush1.xpose.msra.mxu0 0.0
  %86 = vmatprep.subr.mxu0 0.0
  %87 = vmatpush1.xpose.msra.mxu0 0.0
  %88 = vmatprep.subr.mxu0 0.0
  %89 = vmatpush1.xpose.msra.mxu0 0.0
  %90 = vmatprep.subr.mxu0 0.0
  %91 = vmatpush1.xpose.msra.mxu0 0.0
  %92 = vmatprep.subr.mxu0 0.0
  %93 = vmatpush1.xpose.msra.mxu0 0.0
  %94 = vmatprep.subr.mxu0 0.0
  %95 = vmatpush1.xpose.msra.mxu0 0.0
  %96 = vmatprep.subr.mxu0 0.0
  %97 = vmatpush1.xpose.msra.mxu0 0.0
  %98 = vmatprep.subr.mxu0 0.0
  %99 = vmatpush1.xpose.msra.mxu0 0.0
  %100 = vmatprep.subr.mxu0 0.0
  %101 = vmatpush1.xpose.msra.mxu0 0.0
  %102 = vmatprep.subr.mxu0 0.0
  %103 = vmatpush1.xpose.msra.mxu0 0.0
  %104 = vmatprep.subr.mxu0 0.0
  %105 = vmatpush1.xpose.msra.mxu0 0.0
  %106 = vmatprep.subr.mxu0 0.0
  %107 = vmatpush1.xpose.msra.mxu0 0.0
  %108 = vmatprep.subr.mxu0 0.0
  %109 = vmatpush1.xpose.msra.mxu0 0.0
  %110 = vmatprep.subr.mxu0 0.0
  %111 = vmatpush1.xpose.msra.mxu0 0.0
  %112 = vmatprep.subr.mxu0 0.0
  %113 = vmatpush1.xpose.msra.mxu0 0.0
  %114 = vmatprep.subr.mxu0 0.0
  %115 = vmatpush1.xpose.msra.mxu0 0.0
  %116 = vmatprep.subr.mxu0 0.0
  %117 = vmatpush1.xpose.msra.mxu0 0.0
  %118 = vmatprep.mubr.f32.mxu0 0.0
  %119 = vmatmul.mubr.f32.gmra.mrb[0].mxu0 %v40
  %v120 = vpop.f32.mrb[0].mxu0
  %v121 = vadd.f32 %v36, %v120
  %v122 = vpop.f32.mrb[0].mxu0
  %123 = vdwg.mxu0
  %v124 = vmax.f32 %v121, 0.0
  %v125 = vld [vmem:[%s3] sm:$0xff]
  %v126 = vld [vmem:[%s3 + $0x8] sm:$0xff]
  %v127 = vld [vmem:[%s3 + $0x10] sm:$0xf]
  %v128 = vld [vmem:[%s4] sm:$0x1]
  %v130 = vlaneseq
  %v131 = vshrl.u32 %v130, 7
  %v132 = vsub.s32 0, %v131
  %v133 = vrot.slane %v128, %v132
  %vm135 = vcmask 244736
  %v137 = vsel %vm135, %v124, 0
  %v140 = vsel %vm135, %v125, 0
  %v143 = vsel %vm135, %v126, 0
  %v146 = vsel %vm135, %v127, 0
  %148 = vmatprep.subr.mxu0 0.0
  %149 = vmatpush1.xpose.msra.mxu0 %v140
  %150 = vmatprep.subr.mxu0 0.0
  %151 = vmatpush1.xpose.msra.mxu0 %v143
  %152 = vmatprep.subr.mxu0 0.0
  %153 = vmatpush1.xpose.msra.mxu0 %v146
  %154 = vmatprep.subr.mxu0 0.0
  %155 = vmatpush1.xpose.msra.mxu0 0.0
  %156 = vmatprep.subr.mxu0 0.0
  %157 = vmatpush1.xpose.msra.mxu0 0.0
  %158 = vmatprep.subr.mxu0 0.0
  %159 = vmatpush1.xpose.msra.mxu0 0.0
  %160 = vmatprep.subr.mxu0 0.0
  %161 = vmatpush1.xpose.msra.mxu0 0.0
  %162 = vmatprep.subr.mxu0 0.0
  %163 = vmatpush1.xpose.msra.mxu0 0.0
  %164 = vmatprep.subr.mxu0 0.0
  %165 = vmatpush1.xpose.msra.mxu0 0.0
  %166 = vmatprep.subr.mxu0 0.0
  %167 = vmatpush1.xpose.msra.mxu0 0.0
  %168 = vmatprep.subr.mxu0 0.0
  %169 = vmatpush1.xpose.msra.mxu0 0.0
  %170 = vmatprep.subr.mxu0 0.0
  %171 = vmatpush1.xpose.msra.mxu0 0.0
  %172 = vmatprep.subr.mxu0 0.0
  %173 = vmatpush1.xpose.msra.mxu0 0.0
  %174 = vmatprep.subr.mxu0 0.0
  %175 = vmatpush1.xpose.msra.mxu0 0.0
  %176 = vmatprep.subr.mxu0 0.0
  %177 = vmatpush1.xpose.msra.mxu0 0.0
  %178 = vmatprep.subr.mxu0 0.0
  %179 = vmatpush1.xpose.msra.mxu0 0.0
  %180 = vmatprep.subr.mxu0 0.0
  %181 = vmatpush1.xpose.msra.mxu0 0.0
  %182 = vmatprep.subr.mxu0 0.0
  %183 = vmatpush1.xpose.msra.mxu0 0.0
  %184 = vmatprep.subr.mxu0 0.0
  %185 = vmatpush1.xpose.msra.mxu0 0.0
  %186 = vmatprep.subr.mxu0 0.0
  %187 = vmatpush1.xpose.msra.mxu0 0.0
  %188 = vmatprep.subr.mxu0 0.0
  %189 = vmatpush1.xpose.msra.mxu0 0.0
  %190 = vmatprep.subr.mxu0 0.0
  %191 = vmatpush1.xpose.msra.mxu0 0.0
  %192 = vmatprep.subr.mxu0 0.0
  %193 = vmatpush1.xpose.msra.mxu0 0.0
  %194 = vmatprep.subr.mxu0 0.0
  %195 = vmatpush1.xpose.msra.mxu0 0.0
  %196 = vmatprep.subr.mxu0 0.0
  %197 = vmatpush1.xpose.msra.mxu0 0.0
  %198 = vmatprep.subr.mxu0 0.0
  %199 = vmatpush1.xpose.msra.mxu0 0.0
  %200 = vmatprep.subr.mxu0 0.0
  %201 = vmatpush1.xpose.msra.mxu0 0.0
  %202 = vmatprep.subr.mxu0 0.0
  %203 = vmatpush1.xpose.msra.mxu0 0.0
  %204 = vmatprep.subr.mxu0 0.0
  %205 = vmatpush1.xpose.msra.mxu0 0.0
  %206 = vmatprep.subr.mxu0 0.0
  %207 = vmatpush1.xpose.msra.mxu0 0.0
  %208 = vmatprep.subr.mxu0 0.0
  %209 = vmatpush1.xpose.msra.mxu0 0.0
  %210 = vmatprep.subr.mxu0 0.0
  %211 = vmatpush1.xpose.msra.mxu0 0.0
  %212 = vmatprep.mubr.f32.mxu0 0.0
  %213 = vmatmul.mubr.f32.gmra.mrb[0].mxu0 %v137
  %v214 = vpop.f32.mrb[0].mxu0
  %v215 = vadd.f32 %v133, %v214
  %v216 = vpop.f32.mrb[0].mxu0
  %217 = vdwg.mxu0
  %v218 = vmax.f32 %v215, 0.0
  %v219 = vld [vmem:[%s5] sm:$0x3]
  %v220 = vld [vmem:[%s6] sm:$0x1]
  %v222 = vlaneseq
  %v223 = vshrl.u32 %v222, 7
  %v224 = vsub.s32 0, %v223
  %v225 = vrot.slane %v220, %v224
  %vm227 = vcmask 162816
  %v229 = vsel %vm227, %v218, 0
  %v232 = vsel %vm227, %v219, 0
  %234 = vmatprep.subr.mxu0 0.0
  %235 = vmatpush1.xpose.msra.mxu0 %v232
  %236 = vmatprep.subr.mxu0 0.0
  %237 = vmatpush1.xpose.msra.mxu0 0.0
  %238 = vmatprep.subr.mxu0 0.0
  %239 = vmatpush1.xpose.msra.mxu0 0.0
  %240 = vmatprep.subr.mxu0 0.0
  %241 = vmatpush1.xpose.msra.mxu0 0.0
  %242 = vmatprep.subr.mxu0 0.0
  %243 = vmatpush1.xpose.msra.mxu0 0.0
  %244 = vmatprep.subr.mxu0 0.0
  %245 = vmatpush1.xpose.msra.mxu0 0.0
  %246 = vmatprep.subr.mxu0 0.0
  %247 = vmatpush1.xpose.msra.mxu0 0.0
  %248 = vmatprep.subr.mxu0 0.0
  %249 = vmatpush1.xpose.msra.mxu0 0.0
  %250 = vmatprep.subr.mxu0 0.0
  %251 = vmatpush1.xpose.msra.mxu0 0.0
  %252 = vmatprep.subr.mxu0 0.0
  %253 = vmatpush1.xpose.msra.mxu0 0.0
  %254 = vmatprep.subr.mxu0 0.0
  %255 = vmatpush1.xpose.msra.mxu0 0.0
  %256 = vmatprep.subr.mxu0 0.0
  %257 = vmatpush1.xpose.msra.mxu0 0.0
  %258 = vmatprep.subr.mxu0 0.0
  %259 = vmatpush1.xpose.msra.mxu0 0.0
  %260 = vmatprep.subr.mxu0 0.0
  %261 = vmatpush1.xpose.msra.mxu0 0.0
  %262 = vmatprep.subr.mxu0 0.0
  %263 = vmatpush1.xpose.msra.mxu0 0.0
  %264 = vmatprep.subr.mxu0 0.0
  %265 = vmatpush1.xpose.msra.mxu0 0.0
  %266 = vmatprep.subr.mxu0 0.0
  %267 = vmatpush1.xpose.msra.mxu0 0.0
  %268 = vmatprep.subr.mxu0 0.0
  %269 = vmatpush1.xpose.msra.mxu0 0.0
  %270 = vmatprep.subr.mxu0 0.0
  %271 = vmatpush1.xpose.msra.mxu0 0.0
  %272 = vmatprep.subr.mxu0 0.0
  %273 = vmatpush1.xpose.msra.mxu0 0.0
  %274 = vmatprep.subr.mxu0 0.0
  %275 = vmatpush1.xpose.msra.mxu0 0.0
  %276 = vmatprep.subr.mxu0 0.0
  %277 = vmatpush1.xpose.msra.mxu0 0.0
  %278 = vmatprep.subr.mxu0 0.0
  %279 = vmatpush1.xpose.msra.mxu0 0.0
  %280 = vmatprep.subr.mxu0 0.0
  %281 = vmatpush1.xpose.msra.mxu0 0.0
  %282 = vmatprep.subr.mxu0 0.0
  %283 = vmatpush1.xpose.msra.mxu0 0.0
  %284 = vmatprep.subr.mxu0 0.0
  %285 = vmatpush1.xpose.msra.mxu0 0.0
  %286 = vmatprep.subr.mxu0 0.0
  %287 = vmatpush1.xpose.msra.mxu0 0.0
  %288 = vmatprep.subr.mxu0 0.0
  %289 = vmatpush1.xpose.msra.mxu0 0.0
  %290 = vmatprep.subr.mxu0 0.0
  %291 = vmatpush1.xpose.msra.mxu0 0.0
  %292 = vmatprep.subr.mxu0 0.0
  %293 = vmatpush1.xpose.msra.mxu0 0.0
  %294 = vmatprep.subr.mxu0 0.0
  %295 = vmatpush1.xpose.msra.mxu0 0.0
  %296 = vmatprep.subr.mxu0 0.0
  %297 = vmatpush1.xpose.msra.mxu0 0.0
  %298 = vmatprep.mubr.f32.mxu0 0.0
  %299 = vmatmul.mubr.f32.gmra.mrb[0].mxu0 %v229
  %v300 = vpop.f32.mrb[0].mxu0
  %v301 = vadd.f32 %v225, %v300
  %v302 = vpop.f32.mrb[0].mxu0
  %303 = vdwg.mxu0
  %304 = vst.msk [vmem:[%s7] sm:$0xff] %vm38, %v301
  // Predicated region
  $region30: #{tpu_custom_call.1} parent=0 // pred_check
    _
  $region31: #{tpu_custom_call.1} parent=0 // pred_check_branch
    %306 = sbr.rel (0) target = $region33
  $region32: #{tpu_custom_call.1} parent=0 // pred_region
    _
  $region33: #{tpu_custom_call.1} parent=0 // pred_fallthru
    _
  // Predicated region
  $region34: #{tpu_custom_call.1} parent=0 // pred_check
    _
  $region35: #{tpu_custom_call.1} parent=0 // pred_check_branch
    %308 = sbr.rel (0) target = $region37
  $region36: #{tpu_custom_call.1} parent=0 // pred_region
    _
  $region37: #{tpu_custom_call.1} parent=0 // pred_fallthru
    _

</llo_original>
